<compile_context>
chip_gen: v6e
topology: v6e:2x2x1
jax: 0.10.0
libtpu: 0.0.40
codegen_flags: <defaults>
</compile_context>

<pallas_src>
import math

import jax
import jax.numpy as jnp
from jax.experimental import pallas as pl
from jax.experimental.pallas import tpu as pltpu


_LANE = 128
_DEFAULT_VMEM_BUDGET = 12 * 1024 * 1024   # stays under v5e's 16 MiB scoped default
_GRIDLESS_BYTE_CUTOFF = 8 * 1024 * 1024   # ~half the smallest scoped-VMEM default
_TINY_BATCH = 32                          # below this, plain XLA beats a pallas_call
_V5E_DEFAULT_SCOPED = 16 * 1024 * 1024


def _round_up(x, m):
    return ((x + m - 1) // m) * m


def _round_down(x, m):
    return (x // m) * m


def _fused_linear_kernel(x_ref, w_ref, b_ref, o_ref):
    """Single fused matmul + bias add: o = x @ W_cat + b_cat (f32 accumulate)."""
    acc = jnp.dot(x_ref[...], w_ref[...], preferred_element_type=jnp.float32)
    o_ref[...] = (acc + b_ref[...]).astype(o_ref.dtype)


def prepare_output_layer_params(w_reg_t, b_reg, w_ext_t=None, b_ext=None,
                                *, compute_dtype=None):
    """One-time parameter prep (do NOT call per forward step).

    Fuses the regular / extra Linear layers into a single (D, n_pad) weight and
    (1, n_pad) f32 bias, zero-padded to a multiple of 128 output lanes.
    """
    if (w_ext_t is None) != (b_ext is None):
        raise ValueError("w_ext_t and b_ext must be provided together")
    out_reg = w_reg_t.shape[1]
    out_ext = 0 if w_ext_t is None else w_ext_t.shape[1]

    if w_ext_t is not None:
        w_cat = jnp.concatenate([w_reg_t, w_ext_t], axis=1)
        b_cat = jnp.concatenate([b_reg, b_ext], axis=0)
    else:
        w_cat, b_cat = w_reg_t, b_reg

    n_out = out_reg + out_ext
    n_pad = _round_up(n_out, _LANE)
    if n_pad != n_out:
        w_cat = jnp.pad(w_cat, ((0, 0), (0, n_pad - n_out)))
        b_cat = jnp.pad(b_cat, ((0, n_pad - n_out),))

    if compute_dtype is not None:
        w_cat = w_cat.astype(compute_dtype)     # e.g. bf16 weights (numerics change)
    b_cat = b_cat.astype(jnp.float32).reshape(1, n_pad)   # bias add stays f32

    return {"w_cat": w_cat, "b_cat": b_cat,
            "out_reg": out_reg, "out_ext": out_ext, "n_pad": n_pad}


def output_layer_forward(x, params, *, out_dtype=None, batch_tile=None,
                         vmem_budget_bytes=_DEFAULT_VMEM_BUDGET,
                         min_pallas_batch=_TINY_BATCH, return_fused=False):
    """Pallas equivalent of OutputLayer.forward.

    x       : (B, in_features)
    params  : output of prepare_output_layer_params
    returns (regular_outputs, extra_outputs)  [extra is None if num_extra == 0],
    or the padded fused (B, n_pad) block if return_fused=True.
    """
    w_cat, b_cat = params["w_cat"], params["b_cat"]
    out_reg, out_ext, n_pad = params["out_reg"], params["out_ext"], params["n_pad"]
    B, D = x.shape
    assert w_cat.shape == (D, n_pad) and b_cat.shape == (1, n_pad)

    compute_dtype = w_cat.dtype
    out_dtype = out_dtype if out_dtype is not None else x.dtype
    x_c = x.astype(compute_dtype)

    x_by = jnp.dtype(compute_dtype).itemsize
    o_by = jnp.dtype(out_dtype).itemsize
    # Weights + bias are double-buffered by the pipeline machinery too; count x2.
    resident_bytes = 2 * (D * n_pad * x_by + n_pad * 4)
    per_row = 2 * (D * x_by + n_pad * o_by)          # double-buffered x-in + y-out
    align = max(8, 32 // min(x_by, o_by))            # sublane alignment (8 f32 / 16 bf16)

    def _finish(y):
        if return_fused:
            return y                                  # padded fused block; slice lazily
        regular = y[:, :out_reg]
        extra = y[:, out_reg:out_reg + out_ext] if out_ext > 0 else None
        return regular, extra

    # --- Tiny batch: a pallas_call launch costs more than the matmul itself. ---
    if B < min_pallas_batch and batch_tile is None:
        y = (jnp.dot(x_c, w_cat, preferred_element_type=jnp.float32)
             + b_cat).astype(out_dtype)
        return _finish(y)

    # --- Small/medium batch: whole working set fits in VMEM -> gridless. ---
    gridless_bytes = B * D * x_by + B * n_pad * o_by + resident_bytes
    if batch_tile is None and gridless_bytes <= _GRIDLESS_BYTE_CUTOFF:
        vmem = pl.BlockSpec(memory_space=pltpu.MemorySpace.VMEM)
        y = pl.pallas_call(
            _fused_linear_kernel,
            out_shape=jax.ShapeDtypeStruct((B, n_pad), out_dtype),
            in_specs=[vmem, vmem, vmem],
            out_specs=vmem,
        )(x_c, w_cat, b_cat)
        return _finish(y)

    # --- Large batch: tile the batch axis; weights/bias pinned (constant map). ---
    if batch_tile is None:
        tb = (vmem_budget_bytes - resident_bytes) // max(per_row, 1)
        tb = max(_round_down(min(tb, 4096), align), align)
    else:
        tb = max(_round_up(batch_tile, align), align)
    # Keep >= 2 grid steps so v7x's two TensorCores both get work.
    tb = min(tb, max(_round_up(pl.cdiv(B, 2), align), align))
    n_tiles = pl.cdiv(B, tb)

    cparams = {"dimension_semantics": ("parallel",)}
    needed = resident_bytes + tb * per_row
    if needed > _V5E_DEFAULT_SCOPED - 2 * 1024 * 1024:
        # Raise the scoped-VMEM limit only when the tile actually needs it
        # (v5e default is 16 MiB; v6e/v7x default 32 MiB).
        cparams["vmem_limit_bytes"] = int(needed + 4 * 1024 * 1024)

    y = pl.pallas_call(
        _fused_linear_kernel,
        out_shape=jax.ShapeDtypeStruct((B, n_pad), out_dtype),
        grid=(n_tiles,),
        in_specs=[
            pl.BlockSpec((tb, D), lambda i: (i, 0)),
            pl.BlockSpec((D, n_pad), lambda i: (0, 0)),
            pl.BlockSpec((1, n_pad), lambda i: (0, 0)),
        ],
        out_specs=pl.BlockSpec((tb, n_pad), lambda i: (i, 0)),
        compiler_params=pltpu.CompilerParams(**cparams),
    )(x_c, w_cat, b_cat)   # ragged B: Pallas masks the partial last block
    return _finish(y)


def _init_linear(key, in_features, out_features, dtype=jnp.float32):
    """Deterministic init mimicking torch.nn.Linear default (uniform +-1/sqrt(in))."""
    k_w, k_b = jax.random.split(key)
    bound = 1.0 / math.sqrt(in_features)
    w_t = jax.random.uniform(k_w, (in_features, out_features), dtype,
                             minval=-bound, maxval=bound)
    b = jax.random.uniform(k_b, (out_features,), dtype, minval=-bound, maxval=bound)
    return w_t, b


if __name__ == "__main__":
    # Small shapes consistent with the module (fc sees flattened features).
    in_features = 64
    out_features = 35   # fc.out_features (polylanenet regular outputs)
    num_extra = 5

    key = jax.random.PRNGKey(0)
    k_tiny, k_small, k_big, k_reg, k_ext = jax.random.split(key, 5)

    w_reg_t, b_reg = _init_linear(k_reg, in_features, out_features)
    w_ext_t, b_ext = _init_linear(k_ext, in_features, num_extra)

    params = prepare_output_layer_params(w_reg_t, b_reg, w_ext_t, b_ext)
    params_noext = prepare_output_layer_params(w_reg_t, b_reg)
    params_bf16 = prepare_output_layer_params(w_reg_t, b_reg, w_ext_t, b_ext,
                                              compute_dtype=jnp.bfloat16)

    # --- Tiny batch: XLA bypass path (B < 32), with extra outputs ---
    x_tiny = jax.random.normal(k_tiny, (8, in_features), jnp.float32)
    reg_t, ext_t = output_layer_forward(x_tiny, params)
    jax.block_until_ready(reg_t)
    assert reg_t.shape == (8, out_features) and ext_t.shape == (8, num_extra)
    assert jnp.allclose(reg_t, x_tiny @ w_reg_t + b_reg[None, :], atol=1e-5, rtol=1e-5)
    assert jnp.allclose(ext_t, x_tiny @ w_ext_t + b_ext[None, :], atol=1e-5, rtol=1e-5)

    # --- Gridless (whole-working-set-in-VMEM) Pallas path ---
    x_small = jax.random.normal(k_small, (64, in_features), jnp.float32)
    reg_s, ext_s = output_layer_forward(x_small, params)
    jax.block_until_ready(reg_s)
    jax.block_until_ready(ext_s)
    assert jnp.allclose(reg_s, x_small @ w_reg_t + b_reg[None, :], atol=1e-5, rtol=1e-5)
    assert jnp.allclose(ext_s, x_small @ w_ext_t + b_ext[None, :], atol=1e-5, rtol=1e-5)

    # --- num_extra == 0 path (extra_outputs must be None) ---
    reg_only, none_out = output_layer_forward(x_small, params_noext)
    jax.block_until_ready(reg_only)
    assert none_out is None
    assert jnp.allclose(reg_only, x_small @ w_reg_t + b_reg[None, :], atol=1e-5, rtol=1e-5)

    # --- Fused (padded, un-sliced) output option ---
    y_fused = output_layer_forward(x_small, params, return_fused=True)
    jax.block_until_ready(y_fused)
    assert y_fused.shape == (64, params["n_pad"])
    assert jnp.allclose(y_fused[:, :out_features],
                        x_small @ w_reg_t + b_reg[None, :], atol=1e-5, rtol=1e-5)

    # --- Batch-tiled ("parallel") grid path with ragged B (no pad/slice round trip) ---
    big_b = 320   # not a multiple of the 128-row tile -> partial last block is masked
    x_big = jax.random.normal(k_big, (big_b, in_features), jnp.float32)
    reg_b, ext_b = output_layer_forward(x_big, params, batch_tile=128)
    jax.block_until_ready(reg_b)
    jax.block_until_ready(ext_b)
    assert reg_b.shape == (big_b, out_features) and ext_b.shape == (big_b, num_extra)
    assert jnp.allclose(reg_b, x_big @ w_reg_t + b_reg[None, :], atol=1e-5, rtol=1e-5)
    assert jnp.allclose(ext_b, x_big @ w_ext_t + b_ext[None, :], atol=1e-5, rtol=1e-5)

    # --- Optional bf16 compute/output path (numerics differ from f32 reference) ---
    reg_h, ext_h = output_layer_forward(x_small, params_bf16, out_dtype=jnp.bfloat16)
    jax.block_until_ready(reg_h)
    assert reg_h.dtype == jnp.bfloat16 and ext_h.dtype == jnp.bfloat16
    assert jnp.allclose(reg_h.astype(jnp.float32),
                        x_small @ w_reg_t + b_reg[None, :], atol=5e-2, rtol=5e-2)
    assert jnp.allclose(ext_h.astype(jnp.float32),
                        x_small @ w_ext_t + b_ext[None, :], atol=5e-2, rtol=5e-2)

    print("KERNEL_OK")
</pallas_src>

<mosaic_0001>
module attributes {stable_mosaic.version = 11 : i64} {
  func.func @_fused_linear_kernel(%arg0: memref<64x64xf32, #tpu.memory_space<vmem>>, %arg1: memref<64x128xf32, #tpu.memory_space<vmem>>, %arg2: memref<1x128xf32, #tpu.memory_space<vmem>>, %arg3: memref<64x128xf32, #tpu.memory_space<vmem>>) attributes {dimension_semantics = [], scalar_prefetch = 0 : i64, scratch_operands = 0 : i64, tpu.core_type = #tpu.core_type<tc>} {
    %c0 = arith.constant 0 : index
    %c0_0 = arith.constant 0 : index
    %0 = vector.load %arg0[%c0, %c0_0] : memref<64x64xf32, #tpu.memory_space<vmem>>, vector<64x64xf32>
    %c0_1 = arith.constant 0 : index
    %c0_2 = arith.constant 0 : index
    %1 = vector.load %arg1[%c0_1, %c0_2] : memref<64x128xf32, #tpu.memory_space<vmem>>, vector<64x128xf32>
    %cst = arith.constant dense<0.000000e+00> : vector<64x128xf32>
    %2 = tpu.matmul %0, %1, %cst {dimension_numbers = #tpu.dot_dimension_numbers<[1], [0], [0], [1], [0, 0, 1, 1], [], []>} : vector<64x64xf32>, vector<64x128xf32>, vector<64x128xf32> -> vector<64x128xf32>
    %c0_3 = arith.constant 0 : index
    %c0_4 = arith.constant 0 : index
    %3 = vector.load %arg2[%c0_3, %c0_4] : memref<1x128xf32, #tpu.memory_space<vmem>>, vector<1x128xf32>
    %4 = vector.broadcast %3 : vector<1x128xf32> to vector<64x128xf32>
    %5 = arith.addf %2, %4 : vector<64x128xf32>
    %c0_5 = arith.constant 0 : index
    %c0_6 = arith.constant 0 : index
    %6 = vector.load %arg3[%c0_5, %c0_6] : memref<64x128xf32, #tpu.memory_space<vmem>>, vector<64x128xf32>
    tpu.vector_store %arg3[%c0_5, %c0_6], %5 {strides = array<i32>} : memref<64x128xf32, #tpu.memory_space<vmem>>, vector<64x128xf32>,
    return
  }
}

</mosaic_0001>

<llo_original>
// kernel: tpu_custom_call.1
$region0: #{tpu_custom_call.1}
  #allocation0 [shape = 'u32[]', space=smem, size = 0x4, offset = 0x4, fixed_abs, tag = 'smem constant byte address 0x4 - core index']
  #allocation1 [shape = 'u32[144,128]{1,0:T(1,128)}', space=vmem, size = 0x12000, scoped, tag = 'internal scratch']
  %s0 = inlined_call_operand.hbm [shape: f32[64,64], index: 0, kind: input, shape index: {}]
  %s1 = inlined_call_operand.hbm [shape: f32[64,128], index: 1, kind: input, shape index: {}]
  %s2 = inlined_call_operand.vmem [shape: f32[1,128], index: 2, kind: input, shape index: {}]
  %s3 = inlined_call_operand.hbm [shape: f32[64,128], index: 3, kind: output, shape index: {}]
  %s4 = sld [smem:[#allocation0]]
  $region30: #{tpu_custom_call.1} parent=0
    _
  %s6 = ssub.s32 1, %s4
  %s7 = scalar_select 0, %s6, %s4
  $region1: #{tpu_custom_call.1} parent=0
    #allocation2 [shape = 'u8[32768]{0}', space=vmem, size = 0x8000, scoped, tag = 'input window, operand 0, single buffered']
    #allocation3 [shape = 's32[1]{0}', space=sflag, size = 0x4, scoped, tag = 'scoped memory for tpu_custom_call.1']
    #allocation4 [shape = 's32[1]{0}', space=sflag, size = 0x4, scoped, tag = 'scoped memory for tpu_custom_call.1']
    #allocation5 [shape = 'u8[32768]{0}', space=vmem, size = 0x8000, scoped, tag = 'input window, operand 1, single buffered']
    #allocation6 [shape = 's32[1]{0}', space=sflag, size = 0x4, scoped, tag = 'scoped memory for tpu_custom_call.1']
    #allocation7 [shape = 'u8[32768]{0}', space=vmem, size = 0x8000, scoped, tag = 'output window, operand 0, single buffered']
    %8 = vsyncpa [#allocation3], 0
    %9 = vsyncpa [#allocation6], 0
    %10 = vsyncpa [#allocation4], 0
    // Predicated region
    $region2: #{tpu_custom_call.1} parent=1 // pred_check
      _
    $region3: #{tpu_custom_call.1} parent=1 // pred_check_branch
      %12 = sbr.rel (0) target = $region5
    $region4: #{tpu_custom_call.1} parent=1 // pred_region
      %s14 = ssub.s32 1024, 1024
      %15 = vsyncadd [#allocation3], %s14
      %s16 = sshll.u32 [#allocation2], 4
      %s17 = int_to_ptr.vmem [resolvable:$true] %s16
      %22 = dma.hbm_to_vmem [thread:$0]  %s0, 1024, %s17, [#allocation3], 128, 128, 8
    $region5: #{tpu_custom_call.1} parent=1 // pred_fallthru
      _
    // Predicated region
    $region6: #{tpu_custom_call.1} parent=1 // pred_check
      _
    $region7: #{tpu_custom_call.1} parent=1 // pred_check_branch
      %24 = sbr.rel (0) target = $region9
    $region8: #{tpu_custom_call.1} parent=1 // pred_region
      %s26 = ssub.s32 1024, 1024
      %27 = vsyncadd [#allocation6], %s26
      %s28 = sshll.u32 [#allocation5], 4
      %s29 = int_to_ptr.vmem [resolvable:$true] %s28
      %34 = dma.hbm_to_vmem [thread:$0]  %s1, 1024, %s29, [#allocation6], 128, 128, 8
    $region9: #{tpu_custom_call.1} parent=1 // pred_fallthru
      _
    // Predicated region
    $region10: #{tpu_custom_call.1} parent=1 // pred_check
      _
    $region11: #{tpu_custom_call.1} parent=1 // pred_check_branch
      %36 = sbr.rel (0) target = $region13
    $region12: #{tpu_custom_call.1} parent=1 // pred_region
      _
    $region13: #{tpu_custom_call.1} parent=1 // pred_fallthru
      _
    // Predicated region
    $region14: #{tpu_custom_call.1} parent=1 // pred_check
      _
    $region15: #{tpu_custom_call.1} parent=1 // pred_check_branch
      %38 = sbr.rel (0) target = $region17
    $region16: #{tpu_custom_call.1} parent=1 // pred_region
      %39 = dma.done [#allocation3], 1024
    $region17: #{tpu_custom_call.1} parent=1 // pred_fallthru
      _
    // Predicated region
    $region18: #{tpu_custom_call.1} parent=1 // pred_check
      _
    $region19: #{tpu_custom_call.1} parent=1 // pred_check_branch
      %41 = sbr.rel (0) target = $region21
    $region20: #{tpu_custom_call.1} parent=1 // pred_region
      %42 = dma.done [#allocation6], 1024
    $region21: #{tpu_custom_call.1} parent=1 // pred_fallthru
      _
    %v43 = vld [vmem:[#allocation2] sm:$0xff]
    %v44 = vld [vmem:[#allocation2 + $0x8] sm:$0xff]
    %v45 = vld [vmem:[#allocation2 + $0x10] sm:$0xff]
    %v46 = vld [vmem:[#allocation2 + $0x18] sm:$0xff]
    %v47 = vld [vmem:[#allocation2 + $0x20] sm:$0xff]
    %v48 = vld [vmem:[#allocation2 + $0x28] sm:$0xff]
    %v49 = vld [vmem:[#allocation2 + $0x30] sm:$0xff]
    %v50 = vld [vmem:[#allocation2 + $0x38] sm:$0xff]
    %v51 = vld [vmem:[#allocation5] sm:$0xff]
    %v52 = vld [vmem:[#allocation5 + $0x8] sm:$0xff]
    %v53 = vld [vmem:[#allocation5 + $0x10] sm:$0xff]
    %v54 = vld [vmem:[#allocation5 + $0x18] sm:$0xff]
    %v55 = vld [vmem:[#allocation5 + $0x20] sm:$0xff]
    %v56 = vld [vmem:[#allocation5 + $0x28] sm:$0xff]
    %v57 = vld [vmem:[#allocation5 + $0x30] sm:$0xff]
    %v58 = vld [vmem:[#allocation5 + $0x38] sm:$0xff]
    %v59 = vld [vmem:[%s2] sm:$0x1]
    %v61 = vlaneseq
    %v62 = vshrl.u32 %v61, 7
    %v63 = vsub.s32 0, %v62
    %v64 = vrot.slane %v59, %v63
    %vm66 = vcmask 523264
    %v68 = vsel %vm66, %v43, 0
    %v71 = vsel %vm66, %v44, 0
    %v74 = vsel %vm66, %v45, 0
    %v77 = vsel %vm66, %v46, 0
    %v80 = vsel %vm66, %v47, 0
    %v83 = vsel %vm66, %v48, 0
    %v86 = vsel %vm66, %v49, 0
    %v89 = vsel %vm66, %v50, 0
    %91 = vmatprep.subr.mxu0 0.0
    %92 = vmatpush1.msra.mxu0 0.0
    %93 = vmatprep.subr.mxu0 0.0
    %94 = vmatpush1.msra.mxu0 0.0
    %95 = vmatprep.subr.mxu0 0.0
    %96 = vmatpush1.msra.mxu0 0.0
    %97 = vmatprep.subr.mxu0 0.0
    %98 = vmatpush1.msra.mxu0 0.0
    %99 = vmatprep.subr.mxu0 0.0
    %100 = vmatpush1.msra.mxu0 0.0
    %101 = vmatprep.subr.mxu0 0.0
    %102 = vmatpush1.msra.mxu0 0.0
    %103 = vmatprep.subr.mxu0 0.0
    %104 = vmatpush1.msra.mxu0 0.0
    %105 = vmatprep.subr.mxu0 0.0
    %106 = vmatpush1.msra.mxu0 0.0
    %107 = vmatprep.subr.mxu0 0.0
    %108 = vmatpush1.msra.mxu0 %v58
    %109 = vmatprep.subr.mxu0 0.0
    %110 = vmatpush1.msra.mxu0 %v57
    %111 = vmatprep.subr.mxu0 0.0
    %112 = vmatpush1.msra.mxu0 %v56
    %113 = vmatprep.subr.mxu0 0.0
    %114 = vmatpush1.msra.mxu0 %v55
    %115 = vmatprep.subr.mxu0 0.0
    %116 = vmatpush1.msra.mxu0 %v54
    %117 = vmatprep.subr.mxu0 0.0
    %118 = vmatpush1.msra.mxu0 %v53
    %119 = vmatprep.subr.mxu0 0.0
    %120 = vmatpush1.msra.mxu0 %v52
    %121 = vmatprep.subr.mxu0 0.0
    %122 = vmatpush1.msra.mxu0 %v51
    %123 = vmatprep.subr.mxu0 0.0
    %124 = vmatpush2.msra.mxu0 0.0
    %125 = vmatprep.subr.mxu0 0.0
    %126 = vmatpush2.msra.mxu0 0.0
    %127 = vmatprep.subr.mxu0 0.0
    %128 = vmatpush2.msra.mxu0 0.0
    %129 = vmatprep.subr.mxu0 0.0
    %130 = vmatpush2.msra.mxu0 0.0
    %131 = vmatprep.subr.mxu0 0.0
    %132 = vmatpush2.msra.mxu0 0.0
    %133 = vmatprep.subr.mxu0 0.0
    %134 = vmatpush2.msra.mxu0 0.0
    %135 = vmatprep.subr.mxu0 0.0
    %136 = vmatpush2.msra.mxu0 0.0
    %137 = vmatprep.subr.mxu0 0.0
    %138 = vmatpush2.msra.mxu0 0.0
    %139 = vmatprep.subr.mxu0 0.0
    %140 = vmatpush2.msra.mxu0 0.0
    %141 = vmatprep.subr.mxu0 0.0
    %142 = vmatpush2.msra.mxu0 0.0
    %143 = vmatprep.subr.mxu0 0.0
    %144 = vmatpush2.msra.mxu0 0.0
    %145 = vmatprep.subr.mxu0 0.0
    %146 = vmatpush2.msra.mxu0 0.0
    %147 = vmatprep.subr.mxu0 0.0
    %148 = vmatpush2.msra.mxu0 0.0
    %149 = vmatprep.subr.mxu0 0.0
    %150 = vmatpush2.msra.mxu0 0.0
    %151 = vmatprep.subr.mxu0 0.0
    %152 = vmatpush2.msra.mxu0 0.0
    %153 = vmatprep.subr.mxu0 0.0
    %154 = vmatpush2.msra.mxu0 0.0
    %155 = vmatprep.mubr.f32.mxu0 0.0
    %156 = vmatmul.mubr.f32.gmra.mxu0 %v68
    %v157 = vpop.f32.mrf.mxu0
    %v158 = vadd.f32 %v64, %v157
    %v159 = vpop.f32.mrf.mxu0
    %160 = vmatprep.mubr.f32.mxu0 0.0
    %161 = vmatmul.mubr.f32.gmra.mxu0 %v71
    %v162 = vpop.f32.mrf.mxu0
    %v163 = vadd.f32 %v64, %v162
    %v164 = vpop.f32.mrf.mxu0
    %165 = vmatprep.mubr.f32.mxu0 0.0
    %166 = vmatmul.mubr.f32.gmra.mxu0 %v74
    %v167 = vpop.f32.mrf.mxu0
    %v168 = vadd.f32 %v64, %v167
    %v169 = vpop.f32.mrf.mxu0
    %170 = vmatprep.mubr.f32.mxu0 0.0
    %171 = vmatmul.mubr.f32.gmra.mxu0 %v77
    %v172 = vpop.f32.mrf.mxu0
    %v173 = vadd.f32 %v64, %v172
    %v174 = vpop.f32.mrf.mxu0
    %175 = vmatprep.mubr.f32.mxu0 0.0
    %176 = vmatmul.mubr.f32.gmra.mxu0 %v80
    %v177 = vpop.f32.mrf.mxu0
    %v178 = vadd.f32 %v64, %v177
    %v179 = vpop.f32.mrf.mxu0
    %180 = vmatprep.mubr.f32.mxu0 0.0
    %181 = vmatmul.mubr.f32.gmra.mxu0 %v83
    %v182 = vpop.f32.mrf.mxu0
    %v183 = vadd.f32 %v64, %v182
    %v184 = vpop.f32.mrf.mxu0
    %185 = vmatprep.mubr.f32.mxu0 0.0
    %186 = vmatmul.mubr.f32.gmra.mxu0 %v86
    %v187 = vpop.f32.mrf.mxu0
    %v188 = vadd.f32 %v64, %v187
    %v189 = vpop.f32.mrf.mxu0
    %190 = vmatprep.mubr.f32.mxu0 0.0
    %191 = vmatmul.mubr.f32.gmra.mxu0 %v89
    %v192 = vpop.f32.mrf.mxu0
    %v193 = vadd.f32 %v64, %v192
    %v194 = vpop.f32.mrf.mxu0
    %195 = vdwg.mxu0
    %196 = vst [vmem:[#allocation7] sm:$0xff] %v158
    %197 = vst [vmem:[#allocation7 + $0x8] sm:$0xff] %v163
    %198 = vst [vmem:[#allocation7 + $0x10] sm:$0xff] %v168
    %199 = vst [vmem:[#allocation7 + $0x18] sm:$0xff] %v173
    %200 = vst [vmem:[#allocation7 + $0x20] sm:$0xff] %v178
    %201 = vst [vmem:[#allocation7 + $0x28] sm:$0xff] %v183
    %202 = vst [vmem:[#allocation7 + $0x30] sm:$0xff] %v188
    %203 = vst [vmem:[#allocation7 + $0x38] sm:$0xff] %v193
    // Predicated region
    $region22: #{tpu_custom_call.1} parent=1 // pred_check
      _
    $region23: #{tpu_custom_call.1} parent=1 // pred_check_branch
      %205 = sbr.rel (0) target = $region25
    $region24: #{tpu_custom_call.1} parent=1 // pred_region
      %s207 = ssub.s32 1024, 1024
      %208 = vsyncadd [#allocation4], %s207
      %s209 = sshll.u32 [#allocation7], 4
      %s210 = int_to_ptr.vmem [resolvable:$true] %s209
      %215 = dma.vmem_to_hbm [thread:$0]  %s210, 1024, %s3, [#allocation4], 128, 128, 8
    $region25: #{tpu_custom_call.1} parent=1 // pred_fallthru
      _
    // Predicated region
    $region26: #{tpu_custom_call.1} parent=1 // pred_check
      _
    $region27: #{tpu_custom_call.1} parent=1 // pred_check_branch
      %217 = sbr.rel (0) target = $region29
    $region28: #{tpu_custom_call.1} parent=1 // pred_region
      %218 = dma.done [#allocation4], 1024
    $region29: #{tpu_custom_call.1} parent=1 // pred_fallthru
      _
    %219 = vsyncpa [#allocation3], 1
    %220 = vsyncpa [#allocation6], 1
    %221 = vsyncpa [#allocation4], 1

</llo_original>
